<compile_context>
chip_gen: v7x
topology: tpu7x:2x2x1
jax: 0.10.0
libtpu: 0.0.40
codegen_flags: <defaults>
</compile_context>

<pallas_src>
import numpy as np
import jax
import jax.numpy as jnp
from jax import lax
from jax.experimental import pallas as pl
from jax.experimental.pallas import tpu as pltpu


def losstemp_np(bs=4):
    """Numpy port of utils.losstemp — pure index bookkeeping, host-side, static."""
    idx = np.arange(2 * bs)
    entries = []
    for i in range(2 * bs):
        if i < bs:
            if i % 2 == 0:
                sub1 = np.concatenate((idx[:i], idx[i + 1:bs + i], idx[bs + i + 2:]))
                lbl = int(np.nonzero(sub1 == i + 1)[0][0])
                entries.append((i, i + 1, lbl, sub1))
                sub2 = np.concatenate((idx[:i], idx[i + 2:bs + i + 1], idx[bs + i + 2:]))
                lbl = int(np.nonzero(sub2 == bs + i)[0][0])
                entries.append((i, bs + i, lbl, sub2))
                sub3 = np.concatenate((idx[:i], idx[i + 2:bs + i], idx[bs + i + 1:]))
                lbl = int(np.nonzero(sub3 == bs + i + 1)[0][0])
                entries.append((i, bs + i + 1, lbl, sub3))
            else:
                sub1 = np.concatenate((idx[:i - 1], idx[i + 1:bs + i], idx[bs + i + 1:]))
                lbl = int(np.nonzero(sub1 == bs + i - 1)[0][0])
                entries.append((i, bs + i - 1, lbl, sub1))
                sub2 = np.concatenate((idx[:i - 1], idx[i + 1:bs + i - 1], idx[bs + i:]))
                lbl = int(np.nonzero(sub2 == bs + i)[0][0])
                entries.append((i, bs + i, lbl, sub2))
        elif i % 2 == 0:
            sub1 = np.concatenate((idx[:i - bs], idx[i - bs + 2:i], idx[i + 1:]))
            lbl = int(np.nonzero(sub1 == i + 1)[0][0])
            entries.append((i, i + 1, lbl, sub1))
    return entries


def _oneclass_loss_kernel(x1_ref, x2_ref, arow_ref, mask_ref, tgt_ref, out_ref, xcat_ref):
    # x1_ref, x2_ref: (bs, HW)  f32  — spatially-flattened halves of the batch
    # arow_ref:       (M, 2bs)  bf16 — one-hot anchor-row selector per comparison
    # mask_ref:       (M, 2bs)  f32  — 0 on the comparison's "remaining" cols, -1e30 elsewhere
    # tgt_ref:        (M, 2bs)  f32  — one-hot cross-entropy target column per comparison
    # out_ref:        (1, 1)    f32  — SMEM scalar: mean CE over the M comparisons
    # xcat_ref:       (2bs, HW) f32  — VMEM scratch holding concat(x1, x2)
    bs = x1_ref.shape[0]

    # Fold the concat into the kernel: two static sublane-slice stores into scratch.
    xcat_ref[:bs, :] = x1_ref[...]
    xcat_ref[bs:, :] = x2_ref[...]
    xf = xcat_ref[...]                                                 # (2bs, HW) f32
    n, hw = xf.shape

    # Squared Frobenius norms in f32, laid out along lanes as (1, 2bs) via a tiny
    # ones-row dot_general (last-dim/last-dim contraction; avoids a (n,1)->(1,n) relayout).
    xsq = xf * xf
    ones_row = jnp.ones((1, hw), jnp.float32)
    sq_row = lax.dot_general(ones_row, xsq, (((1,), (1,)), ((), ())),
                             preferred_element_type=jnp.float32)       # (1, 2bs)

    # bf16 MXU path for the cross terms (f32 accumulation).
    xb = xf.astype(jnp.bfloat16)                                       # (2bs, HW)
    arow = arow_ref[...]                                               # (M, 2bs) bf16 one-hot
    anchors = jnp.dot(arow, xb, preferred_element_type=jnp.float32)    # (M, HW) anchor rows
    ab = anchors.astype(jnp.bfloat16)
    cross = lax.dot_general(ab, xb, (((1,), (1,)), ((), ())),
                            preferred_element_type=jnp.float32)        # (M, 2bs)

    # Anchor squared norms in f32 via the one-hot applied to the f32 norms (exact select).
    anchor_sq = jnp.sum(arow.astype(jnp.float32) * sq_row,
                        axis=-1, keepdims=True)                        # (M, 1)

    # All needed squared Frobenius distances: ||a||^2 + ||b||^2 - 2<a, b>.
    dfull = anchor_sq + sq_row - 2.0 * cross                           # (M, 2bs)

    # Cross-entropy restricted to the "remaining" columns: additive -1e30 pre-mask
    # before max/exp so excluded columns contribute exactly 0 after exp.
    logits = dfull + mask_ref[...]
    mx = jnp.max(logits, axis=-1, keepdims=True)
    lse = jnp.log(jnp.sum(jnp.exp(logits - mx), axis=-1, keepdims=True)) + mx
    tgt_logit = jnp.sum(tgt_ref[...] * dfull, axis=-1, keepdims=True)  # target logit
    per = (lse - tgt_logit) * (1.0 / lse.shape[0])                     # (M, 1), pre-scaled

    # Scalar loss out through SMEM (avoids a padded lane-masked VMEM writeback).
    out_ref[0, 0] = jnp.sum(per)


class OneClassLossPallas:
    """Pallas/JAX equivalent of OneClassLoss.forward."""

    def __init__(self, batch_size, group_size, reg):
        self.bs = batch_size
        self.gs = group_size     # unused in forward (kept for signature parity)
        self.reg = reg           # unused in forward (kept for signature parity)

        entries = losstemp_np(bs=batch_size)
        # PyTorch forward seeds logits/labels with temp['s10'] and then re-appends every
        # entry in insertion order -> s10 is intentionally duplicated (parity, not a bug).
        order = [10] + list(range(len(entries)))
        M = len(order)
        n = 2 * batch_size
        S = len(entries[0][3])

        arow = np.zeros((M, n), dtype=np.float32)           # anchor-row one-hot (exact in bf16)
        mask = np.full((M, n), -1e30, dtype=np.float32)     # additive pre-mask (0 = keep)
        tgt = np.zeros((M, n), dtype=np.float32)            # CE target one-hot
        rows = np.zeros((M,), dtype=np.int32)
        subs = np.zeros((M, S), dtype=np.int32)
        labels = np.zeros((M,), dtype=np.int32)
        for m, e in enumerate(order):
            i, _, lbl, sub = entries[e]
            arow[m, i] = 1.0
            mask[m, sub] = 0.0
            tgt[m, sub[lbl]] = 1.0
            rows[m], subs[m], labels[m] = i, sub, lbl

        # Device constants, uploaded once in __init__. 0/1 one-hots are exact in bf16,
        # so the anchor-selection matmul runs at full bf16 MXU rate.
        self._arow = jnp.asarray(arow, dtype=jnp.bfloat16)
        self._mask = jnp.asarray(mask)
        self._tgt = jnp.asarray(tgt)
        # Index arrays kept only for the pure-JAX reference / debugging.
        self._rows, self._subs, self._labels = rows, subs, labels

        self._jit_forward = jax.jit(self._forward)

    def _forward(self, x1, x2):
        bs, H, W = x1.shape
        hw = H * W
        # Only a free, contiguous reshape happens outside the kernel; concat + bf16 cast
        # for the MXU happen inside it (norms stay f32 in-kernel).
        x1r = x1.reshape(bs, hw).astype(jnp.float32)
        x2r = x2.reshape(bs, hw).astype(jnp.float32)
        out = pl.pallas_call(
            _oneclass_loss_kernel,
            out_shape=jax.ShapeDtypeStruct((1, 1), jnp.float32),
            in_specs=[
                pl.BlockSpec(memory_space=pltpu.MemorySpace.VMEM),   # x1 (bs, HW)
                pl.BlockSpec(memory_space=pltpu.MemorySpace.VMEM),   # x2 (bs, HW)
                pl.BlockSpec(memory_space=pltpu.MemorySpace.VMEM),   # anchor one-hots (bf16)
                pl.BlockSpec(memory_space=pltpu.MemorySpace.VMEM),   # additive mask
                pl.BlockSpec(memory_space=pltpu.MemorySpace.VMEM),   # target one-hots
            ],
            out_specs=pl.BlockSpec(memory_space=pltpu.MemorySpace.SMEM),
            scratch_shapes=[pltpu.VMEM((2 * bs, hw), jnp.float32)],
        )(x1r, x2r, self._arow, self._mask, self._tgt)
        return out[0, 0]

    def __call__(self, x1, x2):
        return self._jit_forward(x1, x2)

    def reference(self, x1, x2):
        """Pure-JAX f32 reference of the PyTorch forward (diff-based), for validation."""
        bs, H, W = x1.shape
        x = jnp.concatenate([x1, x2], axis=0).reshape(2 * bs, H * W).astype(jnp.float32)
        diff = x[self._rows][:, None, :] - x[self._subs]              # (M, S, HW)
        logits = jnp.sum(diff * diff, axis=-1)                        # (M, S)
        lse = jax.nn.logsumexp(logits, axis=-1)
        t = jnp.take_along_axis(logits, jnp.asarray(self._labels)[:, None], axis=-1)[:, 0]
        return jnp.mean(lse - t)


if __name__ == "__main__":
    # bs=4 is the smallest batch for which temp['s10'] exists; HW = 16*16 = 256 (lane-dense).
    bs, g, reg = 4, 2, 0.1
    H = W = 16

    key = jax.random.PRNGKey(0)
    k1, k2 = jax.random.split(key)
    x1 = jax.random.normal(k1, (bs, H, W), dtype=jnp.float32)
    x2 = jax.random.normal(k2, (bs, H, W), dtype=jnp.float32)

    loss_fn = OneClassLossPallas(bs, g, reg)
    loss = loss_fn(x1, x2)
    jax.block_until_ready(loss)

    # Sanity check against the pure-JAX f32 reference; slack covers the bf16 MXU cross term.
    ref = loss_fn.reference(x1, x2)
    np.testing.assert_allclose(np.asarray(loss), np.asarray(ref), rtol=5e-2, atol=1.0)

    print("KERNEL_OK")
</pallas_src>

<mosaic_0001>
module attributes {stable_mosaic.version = 11 : i64} {
  func.func @_oneclass_loss_kernel(%arg0: memref<4x256xf32, #tpu.memory_space<vmem>>, %arg1: memref<4x256xf32, #tpu.memory_space<vmem>>, %arg2: memref<13x8xbf16, #tpu.memory_space<vmem>>, %arg3: memref<13x8xf32, #tpu.memory_space<vmem>>, %arg4: memref<13x8xf32, #tpu.memory_space<vmem>>, %arg5: memref<1x1xf32, #tpu.memory_space<smem>>, %arg6: memref<8x256xf32, #tpu.memory_space<vmem>>) attributes {dimension_semantics = [], scalar_prefetch = 0 : i64, scratch_operands = 1 : i64, tpu.core_type = #tpu.core_type<tc>} {
    %c0 = arith.constant 0 : index
    %c0_0 = arith.constant 0 : index
    %0 = vector.load %arg0[%c0, %c0_0] : memref<4x256xf32, #tpu.memory_space<vmem>>, vector<4x256xf32>
    %c0_1 = arith.constant 0 : index
    %c0_2 = arith.constant 0 : index
    %1 = vector.load %arg6[%c0_1, %c0_2] : memref<8x256xf32, #tpu.memory_space<vmem>>, vector<4x256xf32>
    tpu.vector_store %arg6[%c0_1, %c0_2], %0 {strides = array<i32>} : memref<8x256xf32, #tpu.memory_space<vmem>>, vector<4x256xf32>,
    %c0_3 = arith.constant 0 : index
    %c0_4 = arith.constant 0 : index
    %2 = vector.load %arg1[%c0_3, %c0_4] : memref<4x256xf32, #tpu.memory_space<vmem>>, vector<4x256xf32>
    %c4 = arith.constant 4 : index
    %c0_5 = arith.constant 0 : index
    %3 = vector.load %arg6[%c4, %c0_5] : memref<8x256xf32, #tpu.memory_space<vmem>>, vector<4x256xf32>
    tpu.vector_store %arg6[%c4, %c0_5], %2 {strides = array<i32>} : memref<8x256xf32, #tpu.memory_space<vmem>>, vector<4x256xf32>,
    %c0_6 = arith.constant 0 : index
    %c0_7 = arith.constant 0 : index
    %4 = vector.load %arg6[%c0_6, %c0_7] : memref<8x256xf32, #tpu.memory_space<vmem>>, vector<8x256xf32>
    %5 = arith.mulf %4, %4 : vector<8x256xf32>
    %cst = arith.constant 1.000000e+00 : f32
    %6 = vector.broadcast %cst : f32 to vector<1x256xf32>
    %cst_8 = arith.constant dense<0.000000e+00> : vector<1x8xf32>
    %7 = tpu.matmul %6, %5, %cst_8 {dimension_numbers = #tpu.dot_dimension_numbers<[1], [1], [0], [0], [0, 0, 1, 0], [], []>} : vector<1x256xf32>, vector<8x256xf32>, vector<1x8xf32> -> vector<1x8xf32>
    %8 = arith.truncf %4 : vector<8x256xf32> to vector<8x256xbf16>
    %c0_9 = arith.constant 0 : index
    %c0_10 = arith.constant 0 : index
    %9 = vector.load %arg2[%c0_9, %c0_10] : memref<13x8xbf16, #tpu.memory_space<vmem>>, vector<13x8xbf16>
    %cst_11 = arith.constant dense<0.000000e+00> : vector<13x256xf32>
    %10 = tpu.matmul %9, %8, %cst_11 {dimension_numbers = #tpu.dot_dimension_numbers<[1], [0], [0], [1], [0, 0, 1, 1], [], []>} : vector<13x8xbf16>, vector<8x256xbf16>, vector<13x256xf32> -> vector<13x256xf32>
    %11 = arith.truncf %10 : vector<13x256xf32> to vector<13x256xbf16>
    %cst_12 = arith.constant dense<0.000000e+00> : vector<13x8xf32>
    %12 = tpu.matmul %11, %8, %cst_12 {dimension_numbers = #tpu.dot_dimension_numbers<[1], [1], [0], [0], [0, 0, 1, 0], [], []>} : vector<13x256xbf16>, vector<8x256xbf16>, vector<13x8xf32> -> vector<13x8xf32>
    %13 = arith.extf %9 : vector<13x8xbf16> to vector<13x8xf32>
    %14 = vector.broadcast %7 : vector<1x8xf32> to vector<13x8xf32>
    %15 = arith.mulf %13, %14 : vector<13x8xf32>
    %cst_13 = arith.constant dense<0.000000e+00> : vector<13xf32>
    %16 = vector.multi_reduction <add>, %15, %cst_13 [1] : vector<13x8xf32> to vector<13xf32>
    %17 = vector.shape_cast %16 : vector<13xf32> to vector<13x1xf32>
    %18 = vector.broadcast %17 : vector<13x1xf32> to vector<13x8xf32>
    %19 = vector.broadcast %7 : vector<1x8xf32> to vector<13x8xf32>
    %20 = arith.addf %18, %19 : vector<13x8xf32>
    %cst_14 = arith.constant 2.000000e+00 : f32
    %21 = vector.broadcast %cst_14 : f32 to vector<13x8xf32>
    %22 = arith.mulf %21, %12 : vector<13x8xf32>
    %23 = arith.subf %20, %22 : vector<13x8xf32>
    %c0_15 = arith.constant 0 : index
    %c0_16 = arith.constant 0 : index
    %24 = vector.load %arg3[%c0_15, %c0_16] : memref<13x8xf32, #tpu.memory_space<vmem>>, vector<13x8xf32>
    %25 = arith.addf %23, %24 : vector<13x8xf32>
    %cst_17 = arith.constant dense<0xFF800000> : vector<13xf32>
    %26 = vector.multi_reduction <maximumf>, %25, %cst_17 [1] : vector<13x8xf32> to vector<13xf32>
    %27 = vector.shape_cast %26 : vector<13xf32> to vector<13x1xf32>
    %28 = vector.broadcast %27 : vector<13x1xf32> to vector<13x8xf32>
    %29 = arith.subf %25, %28 : vector<13x8xf32>
    %30 = math.exp %29 : vector<13x8xf32>
    %cst_18 = arith.constant dense<0.000000e+00> : vector<13xf32>
    %31 = vector.multi_reduction <add>, %30, %cst_18 [1] : vector<13x8xf32> to vector<13xf32>
    %32 = vector.shape_cast %31 : vector<13xf32> to vector<13x1xf32>
    %33 = math.log %32 : vector<13x1xf32>
    %34 = arith.addf %33, %27 : vector<13x1xf32>
    %c0_19 = arith.constant 0 : index
    %c0_20 = arith.constant 0 : index
    %35 = vector.load %arg4[%c0_19, %c0_20] : memref<13x8xf32, #tpu.memory_space<vmem>>, vector<13x8xf32>
    %36 = arith.mulf %35, %23 : vector<13x8xf32>
    %cst_21 = arith.constant dense<0.000000e+00> : vector<13xf32>
    %37 = vector.multi_reduction <add>, %36, %cst_21 [1] : vector<13x8xf32> to vector<13xf32>
    %38 = vector.shape_cast %37 : vector<13xf32> to vector<13x1xf32>
    %39 = arith.subf %34, %38 : vector<13x1xf32>
    %cst_22 = arith.constant 0.0769230798 : f32
    %40 = vector.broadcast %cst_22 : f32 to vector<13x1xf32>
    %41 = arith.mulf %39, %40 : vector<13x1xf32>
    %42 = vector.shape_cast %41 : vector<13x1xf32> to vector<1x13x1xf32>
    %cst_23 = arith.constant dense<0.000000e+00> : vector<1xf32>
    %43 = vector.multi_reduction <add>, %42, %cst_23 [1, 2] : vector<1x13x1xf32> to vector<1xf32>
    %44 = vector.shape_cast %43 : vector<1xf32> to vector<1x1x1xf32>
    %45 = vector.extract %44[0, 0, 0] : f32 from vector<1x1x1xf32>
    %c0_24 = arith.constant 0 : index
    %c0_25 = arith.constant 0 : index
    %46 = memref.load %arg5[%c0_24, %c0_25] : memref<1x1xf32, #tpu.memory_space<smem>>
    memref.store %45, %arg5[%c0_24, %c0_25] : memref<1x1xf32, #tpu.memory_space<smem>>
    return
  }
}

</mosaic_0001>

<llo_original>
// kernel: _forward.1
$region0: #{_forward.1}
  #allocation0 [shape = 'u32[]', space=smem, size = 0x4, offset = 0x4, fixed_abs, tag = 'smem constant byte address 0x4 - core index']
  #allocation1 [shape = 'u32[144,128]{1,0:T(1,128)}', space=vmem, size = 0x12000, scoped, tag = 'internal scratch']
  #allocation2 [shape = 'f32[8,256]{1,0:T(8,128)}', space=vmem, size = 0x2000, scoped, tag = 'scratch operand']
  %s0 = inlined_call_operand.vmem [shape: f32[4,256], index: 0, kind: input, shape index: {}]
  %s1 = inlined_call_operand.vmem [shape: f32[4,256], index: 1, kind: input, shape index: {}]
  %s2 = inlined_call_operand.vmem [shape: bf16[13,8], index: 2, kind: input, shape index: {}]
  %s3 = inlined_call_operand.vmem [shape: f32[13,8], index: 3, kind: input, shape index: {}]
  %s4 = inlined_call_operand.vmem [shape: f32[13,8], index: 4, kind: input, shape index: {}]
  %s5 = inlined_call_operand.hbm [shape: f32[1,1], index: 5, kind: output, shape index: {}]
  %s6 = sld [smem:[#allocation0]]
  $region30: #{_forward.1} parent=0
    _
  %s8 = ssub.s32 1, %s6
  %s9 = scalar_select 0, %s8, %s6
  $region1: #{_forward.1} parent=0
    #allocation3 [shape = 'u8[512]{0}', space=smem, size = 0x200, scoped, tag = 'output window, operand 0, single buffered']
    #allocation4 [shape = 's32[1]{0}', space=sflag, size = 0x4, scoped, tag = 'scoped memory for _forward.1']
    %10 = vsyncpa [#allocation4], 0
    // Predicated region
    $region2: #{_forward.1} parent=1 // pred_check
      _
    $region3: #{_forward.1} parent=1 // pred_check_branch
      %12 = sbr.rel (0) target = $region5
    $region4: #{_forward.1} parent=1 // pred_region
      _
    $region5: #{_forward.1} parent=1 // pred_fallthru
      _
    // Predicated region
    $region6: #{_forward.1} parent=1 // pred_check
      _
    $region7: #{_forward.1} parent=1 // pred_check_branch
      %14 = sbr.rel (0) target = $region9
    $region8: #{_forward.1} parent=1 // pred_region
      _
    $region9: #{_forward.1} parent=1 // pred_fallthru
      _
    // Predicated region
    $region10: #{_forward.1} parent=1 // pred_check
      _
    $region11: #{_forward.1} parent=1 // pred_check_branch
      %16 = sbr.rel (0) target = $region13
    $region12: #{_forward.1} parent=1 // pred_region
      _
    $region13: #{_forward.1} parent=1 // pred_fallthru
      _
    // Predicated region
    $region14: #{_forward.1} parent=1 // pred_check
      _
    $region15: #{_forward.1} parent=1 // pred_check_branch
      %18 = sbr.rel (0) target = $region17
    $region16: #{_forward.1} parent=1 // pred_region
      _
    $region17: #{_forward.1} parent=1 // pred_fallthru
      _
    // Predicated region
    $region18: #{_forward.1} parent=1 // pred_check
      _
    $region19: #{_forward.1} parent=1 // pred_check_branch
      %20 = sbr.rel (0) target = $region21
    $region20: #{_forward.1} parent=1 // pred_region
      _
    $region21: #{_forward.1} parent=1 // pred_fallthru
      _
    %v22 = vld [vmem:[%s0] sm:$0xff]
    %v24 = vcombine.high %v22, %v22
    %26 = vst [vmem:[#allocation2] sm:$0xf] %v22
    %27 = vst [vmem:[#allocation2 + $0x8] sm:$0xf] %v24
    %v28 = vld [vmem:[%s1] sm:$0xff]
    %v30 = vcombine.low %v28, %v28
    %32 = vst [vmem:[#allocation2] sm:$0xf0] %v30
    %33 = vst [vmem:[#allocation2 + $0x8] sm:$0xf0] %v28
    %v34 = vld [vmem:[#allocation2] sm:$0xff]
    %v35 = vld [vmem:[#allocation2 + $0x8] sm:$0xff]
    %v36 = vmul.f32 %v34, %v34
    %v37 = vmul.f32 %v35, %v35
    %38 = vmatprep.subr.mxu0 %v37
    %39 = vmatpush1.xpose.msra.mxu0 %v36
    %40 = vmatprep.subr.mxu0 0.0
    %41 = vmatpush1.xpose.msra.mxu0 0.0
    %42 = vmatprep.subr.mxu0 0.0
    %43 = vmatpush1.xpose.msra.mxu0 0.0
    %44 = vmatprep.subr.mxu0 0.0
    %45 = vmatpush1.xpose.msra.mxu0 0.0
    %46 = vmatprep.subr.mxu0 0.0
    %47 = vmatpush1.xpose.msra.mxu0 0.0
    %48 = vmatprep.subr.mxu0 0.0
    %49 = vmatpush1.xpose.msra.mxu0 0.0
    %50 = vmatprep.subr.mxu0 0.0
    %51 = vmatpush1.xpose.msra.mxu0 0.0
    %52 = vmatprep.subr.mxu0 0.0
    %53 = vmatpush1.xpose.msra.mxu0 0.0
    %54 = vmatprep.subr.mxu0 0.0
    %55 = vmatpush1.xpose.msra.mxu0 0.0
    %56 = vmatprep.subr.mxu0 0.0
    %57 = vmatpush1.xpose.msra.mxu0 0.0
    %58 = vmatprep.subr.mxu0 0.0
    %59 = vmatpush1.xpose.msra.mxu0 0.0
    %60 = vmatprep.subr.mxu0 0.0
    %61 = vmatpush1.xpose.msra.mxu0 0.0
    %62 = vmatprep.subr.mxu0 0.0
    %63 = vmatpush1.xpose.msra.mxu0 0.0
    %64 = vmatprep.subr.mxu0 0.0
    %65 = vmatpush1.xpose.msra.mxu0 0.0
    %66 = vmatprep.subr.mxu0 0.0
    %67 = vmatpush1.xpose.msra.mxu0 0.0
    %68 = vmatprep.subr.mxu0 0.0
    %69 = vmatpush1.xpose.msra.mxu0 0.0
    %70 = vmatprep.subr.mxu0 0.0
    %71 = vmatpush1.xpose.msra.mxu0 0.0
    %72 = vmatprep.subr.mxu0 0.0
    %73 = vmatpush1.xpose.msra.mxu0 0.0
    %74 = vmatprep.subr.mxu0 0.0
    %75 = vmatpush1.xpose.msra.mxu0 0.0
    %76 = vmatprep.subr.mxu0 0.0
    %77 = vmatpush1.xpose.msra.mxu0 0.0
    %78 = vmatprep.subr.mxu0 0.0
    %79 = vmatpush1.xpose.msra.mxu0 0.0
    %80 = vmatprep.subr.mxu0 0.0
    %81 = vmatpush1.xpose.msra.mxu0 0.0
    %82 = vmatprep.subr.mxu0 0.0
    %83 = vmatpush1.xpose.msra.mxu0 0.0
    %84 = vmatprep.subr.mxu0 0.0
    %85 = vmatpush1.xpose.msra.mxu0 0.0
    %86 = vmatprep.subr.mxu0 0.0
    %87 = vmatpush1.xpose.msra.mxu0 0.0
    %88 = vmatprep.subr.mxu0 0.0
    %89 = vmatpush1.xpose.msra.mxu0 0.0
    %90 = vmatprep.subr.mxu0 0.0
    %91 = vmatpush1.xpose.msra.mxu0 0.0
    %92 = vmatprep.subr.mxu0 0.0
    %93 = vmatpush1.xpose.msra.mxu0 0.0
    %94 = vmatprep.subr.mxu0 0.0
    %95 = vmatpush1.xpose.msra.mxu0 0.0
    %96 = vmatprep.subr.mxu0 0.0
    %97 = vmatpush1.xpose.msra.mxu0 0.0
    %98 = vmatprep.subr.mxu0 0.0
    %99 = vmatpush1.xpose.msra.mxu0 0.0
    %100 = vmatprep.subr.mxu0 0.0
    %101 = vmatpush1.xpose.msra.mxu0 0.0
    %102 = vmatprep.mubr.f32.mxu0 1.0
    %103 = vmatmul.mubr.f32.gmra.mrb[0].mxu0 1.0
    %v104 = vpop.f32.mrb[0].mxu0
    %v105 = vadd.f32 0.0, %v104
    %v106 = vpop.f32.mrb[0].mxu0
    %107 = vdwg.mxu0
    %v108 = vpack.c.bf16 %v34, %v34
    %v109 = vpack.c.bf16 %v35, %v35
    %v110 = vld [vmem:[%s2] sm:$0xf]
    %v111 = vld [vmem:[%s2 + $0x4] sm:$0x7]
    %v114 = vunpack.c.l.b16 %v110
    %v115 = vunpack.c.l.b16 %v111
    %v116 = vpack.c.b16 %v115, %v114
    %vm117 = vcmask 64512
    %v119 = vsel %vm117, %v116, 0
    %vm121 = vcmask 1043456
    %v123 = vsel %vm121, %v108, 0
    %v126 = vsel %vm121, %v109, 0
    %128 = vmatprep.subr.bf16.mxu0 %v126
    %129 = vmatpush1.bf16.msra.mxu0 %v123
    %130 = vmatprep.subr.bf16.mxu0 0
    %131 = vmatpush1.bf16.msra.mxu0 0
    %132 = vmatprep.subr.bf16.mxu0 0
    %133 = vmatpush1.bf16.msra.mxu0 0
    %134 = vmatprep.subr.bf16.mxu0 0
    %135 = vmatpush1.bf16.msra.mxu0 0
    %136 = vmatprep.subr.bf16.mxu0 0
    %137 = vmatpush1.bf16.msra.mxu0 0
    %138 = vmatprep.subr.bf16.mxu0 0
    %139 = vmatpush1.bf16.msra.mxu0 0
    %140 = vmatprep.subr.bf16.mxu0 0
    %141 = vmatpush1.bf16.msra.mxu0 0
    %142 = vmatprep.subr.bf16.mxu0 0
    %143 = vmatpush1.bf16.msra.mxu0 0
    %144 = vmatprep.subr.bf16.mxu0 0
    %145 = vmatpush1.bf16.msra.mxu0 0
    %146 = vmatprep.subr.bf16.mxu0 0
    %147 = vmatpush1.bf16.msra.mxu0 0
    %148 = vmatprep.subr.bf16.mxu0 0
    %149 = vmatpush1.bf16.msra.mxu0 0
    %150 = vmatprep.subr.bf16.mxu0 0
    %151 = vmatpush1.bf16.msra.mxu0 0
    %152 = vmatprep.subr.bf16.mxu0 0
    %153 = vmatpush1.bf16.msra.mxu0 0
    %154 = vmatprep.subr.bf16.mxu0 0
    %155 = vmatpush1.bf16.msra.mxu0 0
    %156 = vmatprep.subr.bf16.mxu0 0
    %157 = vmatpush1.bf16.msra.mxu0 0
    %158 = vmatprep.subr.bf16.mxu0 0
    %159 = vmatpush1.bf16.msra.mxu0 0
    %160 = vmatprep.mubr.bf16.mxu0 0
    %161 = vmatmul.mubr.bf16.gmra.mrb[0].mxu0 %v119
    %v162 = vpop.f32.mrb[0].mxu0
    %v163 = vadd.f32 0.0, %v162
    %v164 = vpop.f32.mrb[0].mxu0
    %v165 = vadd.f32 0.0, %v164
    %v166 = vpop.f32.mrb[0].mxu0
    %v167 = vadd.f32 0.0, %v166
    %v168 = vpop.f32.mrb[0].mxu0
    %v169 = vadd.f32 0.0, %v168
    %170 = vdwg.mxu0
    %v171 = vpack.c.bf16 %v167, %v163
    %v172 = vpack.c.bf16 %v169, %v165
    %173 = vmatprep.subr.bf16.mxu0 %v109
    %174 = vmatpush1.bf16.xpose.msra.mxu0 %v108
    %175 = vmatprep.subr.bf16.mxu0 0
    %176 = vmatpush1.bf16.xpose.msra.mxu0 0
    %177 = vmatprep.subr.bf16.mxu0 0
    %178 = vmatpush1.bf16.xpose.msra.mxu0 0
    %179 = vmatprep.subr.bf16.mxu0 0
    %180 = vmatpush1.bf16.xpose.msra.mxu0 0
    %181 = vmatprep.subr.bf16.mxu0 0
    %182 = vmatpush1.bf16.xpose.msra.mxu0 0
    %183 = vmatprep.subr.bf16.mxu0 0
    %184 = vmatpush1.bf16.xpose.msra.mxu0 0
    %185 = vmatprep.subr.bf16.mxu0 0
    %186 = vmatpush1.bf16.xpose.msra.mxu0 0
    %187 = vmatprep.subr.bf16.mxu0 0
    %188 = vmatpush1.bf16.xpose.msra.mxu0 0
    %189 = vmatprep.subr.bf16.mxu0 0
    %190 = vmatpush1.bf16.xpose.msra.mxu0 0
    %191 = vmatprep.subr.bf16.mxu0 0
    %192 = vmatpush1.bf16.xpose.msra.mxu0 0
    %193 = vmatprep.subr.bf16.mxu0 0
    %194 = vmatpush1.bf16.xpose.msra.mxu0 0
    %195 = vmatprep.subr.bf16.mxu0 0
    %196 = vmatpush1.bf16.xpose.msra.mxu0 0
    %197 = vmatprep.subr.bf16.mxu0 0
    %198 = vmatpush1.bf16.xpose.msra.mxu0 0
    %199 = vmatprep.subr.bf16.mxu0 0
    %200 = vmatpush1.bf16.xpose.msra.mxu0 0
    %201 = vmatprep.subr.bf16.mxu0 0
    %202 = vmatpush1.bf16.xpose.msra.mxu0 0
    %203 = vmatprep.subr.bf16.mxu0 0
    %204 = vmatpush1.bf16.xpose.msra.mxu0 0
    %205 = vmatprep.mubr.bf16.mxu0 %v172
    %206 = vmatmul.mubr.bf16.gmra.mrb[0].mxu0 %v171
    %v207 = vpop.f32.mrb[0].mxu0
    %v208 = vadd.f32 0.0, %v207
    %v209 = vpop.f32.mrb[0].mxu0
    %v210 = vpop.f32.mrb[0].mxu0
    %v211 = vadd.f32 0.0, %v210
    %v212 = vpop.f32.mrb[0].mxu0
    %213 = vdwg.mxu0
    %v214 = vunpack.c.l.bf16 %v110
    %v215 = vunpack.c.l.bf16 %v111
    %v216 = vlaneseq
    %v217 = vshrl.u32 %v216, 7
    %v218 = vsub.s32 0, %v217
    %v219 = vrot.slane %v105, %v218
    %v220 = vmul.f32 %v214, %v219
    %v221 = vmul.f32 %v215, %v219
    %v222 = vsel %vm117, %v220, 0.0
    %223 = vadd.xlane.f32.xlu0 %v222
    %v224 = vpop.xlane.xlu0 %223
    %vm225 = vcmask 61440
    %v226 = vsel %vm225, %v221, 0.0
    %227 = vadd.xlane.f32.xlu0 %v226
    %v228 = vpop.xlane.xlu0 %227
    %v229 = vadd.f32 %v224, %v219
    %v230 = vadd.f32 %v228, %v219
    %v231 = vmul.f32 %v208, 2.0
    %v232 = vmul.f32 %v211, 2.0
    %v233 = vsub.f32 %v229, %v231
    %v234 = vsub.f32 %v230, %v232
    %v235 = vld [vmem:[%s3] sm:$0xff]
    %v236 = vld [vmem:[%s3 + $0x8] sm:$0x1f]
    %v237 = vadd.f32 %v233, %v235
    %v238 = vadd.f32 %v234, %v236
    %v239 = vsel %vm117, %v237, -inf
    %240 = vmax.xlane.f32.xlu0 %v239
    %v241 = vpop.xlane.xlu0 %240
    %v242 = vsel %vm225, %v238, -inf
    %243 = vmax.xlane.f32.xlu0 %v242
    %v244 = vpop.xlane.xlu0 %243
    %v245 = vsub.f32 %v237, %v241
    %v246 = vsub.f32 %v238, %v244
    %v247 = vmul.f32 %v245, 1.442695
    %v248 = vpow.pop %v247
    %v249 = vmul.f32 %v246, 1.442695
    %v250 = vpow.pop %v249
    %v251 = vsel %vm117, %v248, 0.0
    %252 = vadd.xlane.f32.xlu0 %v251
    %v253 = vpop.xlane.xlu0 %252
    %v254 = vsel %vm225, %v250, 0.0
    %255 = vadd.xlane.f32.xlu0 %v254
    %v256 = vpop.xlane.xlu0 %255
    %v257 = vlog2.pop %v253
    %v258 = vmul.f32 %v257, 0.6931472
    %v259 = vlog2.pop %v256
    %v260 = vmul.f32 %v259, 0.6931472
    %v261 = vadd.f32 %v258, %v241
    %v262 = vadd.f32 %v260, %v244
    %v263 = vld [vmem:[%s4] sm:$0xff]
    %v264 = vld [vmem:[%s4 + $0x8] sm:$0x1f]
    %v265 = vmul.f32 %v263, %v233
    %v266 = vmul.f32 %v264, %v234
    %v267 = vsel %vm117, %v265, 0.0
    %268 = vadd.xlane.f32.xlu0 %v267
    %v269 = vpop.xlane.xlu0 %268
    %v270 = vsel %vm225, %v266, 0.0
    %271 = vadd.xlane.f32.xlu0 %v270
    %v272 = vpop.xlane.xlu0 %271
    %v273 = vsub.f32 %v261, %v269
    %v274 = vsub.f32 %v262, %v272
    %v275 = vmul.f32 %v273, 0.07692308
    %v276 = vmul.f32 %v274, 0.07692308
    %vm277 = vcmask 7168
    %v278 = vsel %vm277, %v275, 0.0
    %vm279 = vcmask 4096
    %v280 = vsel %vm279, %v276, 0.0
    %v281 = vadd.f32 %v278, %v280
    %282 = vadd.xlane.f32.xlu0 %v281
    %v283 = vpop.xlane.xlu0 %282
    %v284 = vrot.slane %v283, 4
    %v285 = vadd.f32 %v283, %v284
    %v286 = vrot.slane %v285, 2
    %v287 = vadd.f32 %v285, %v286
    %v288 = vrot.slane %v287, 1
    %v289 = vadd.f32 %v287, %v288
    %s290 = vtos %v289
    %s291 = scalar_lea.smem [#allocation3], 0
    %292 = sst [smem:[%s291]] %s290
    // Predicated region
    $region22: #{_forward.1} parent=1 // pred_check
      _
    $region23: #{_forward.1} parent=1 // pred_check_branch
      %294 = sbr.rel (0) target = $region25
    $region24: #{_forward.1} parent=1 // pred_region
      %s296 = ssub.s32 16, 16
      %297 = vsyncadd [#allocation4], %s296
      %300 = dma.smem_to_hbm [#allocation3], 16, %s5, [#allocation4]
    $region25: #{_forward.1} parent=1 // pred_fallthru
      _
    // Predicated region
    $region26: #{_forward.1} parent=1 // pred_check
      _
    $region27: #{_forward.1} parent=1 // pred_check_branch
      %302 = sbr.rel (0) target = $region29
    $region28: #{_forward.1} parent=1 // pred_region
      %303 = dma.done [#allocation4], 16
    $region29: #{_forward.1} parent=1 // pred_fallthru
      _
    %304 = sfence
    %305 = vsyncpa [#allocation4], 1

</llo_original>
